<compile_context>
chip_gen: v7x
topology: tpu7x:2x2x1
jax: 0.10.0
libtpu: 0.0.40
codegen_flags: <defaults>
</compile_context>

<pallas_src>
import jax
import jax.numpy as jnp
from jax.experimental import pallas as pl
from jax.experimental.pallas import tpu as pltpu


# ----------------------------- Pallas kernel -------------------------------

def _make_fused_kernel(num_layers, kh, kw, w0):
    """Whole-network kernel for one batch item (channels x flat-spatial)."""
    s_max = (kh - 1) * w0 + (kw - 1)   # flat shift of the last tap

    def kernel(x_ref, *refs):
        wb_refs = refs[:2 * num_layers]
        sig_ref = refs[2 * num_layers]
        pre_ref = refs[2 * num_layers + 1]

        act = x_ref[0].astype(jnp.float32)          # (Cin0, H*W), spatial on lanes
        for layer in range(num_layers):
            w_mat = wb_refs[2 * layer][...]          # (Cout, kh*kw*Cin)
            bias = wb_refs[2 * layer + 1][...]       # (Cout, 1)
            l_in = act.shape[1]
            l_out = l_in - s_max
            # im2col: tap (dy, dx) is the flat activation window starting at
            # dy*W + dx -- a contiguous lane slice, no reshape, no wraparound.
            rows = []
            for dy in range(kh):
                for dx in range(kw):
                    s = dy * w0 + dx
                    rows.append(act[:, s:s + l_out])
            col = jnp.concatenate(rows, axis=0)      # (kh*kw*Cin, l_out)
            acc = jnp.dot(w_mat, col, preferred_element_type=jnp.float32)
            acc = acc + bias                         # (Cout, l_out)
            if layer < num_layers - 1:
                act = jnp.maximum(acc, 0.0)
            else:
                pre_ref[0] = acc.astype(pre_ref.dtype)
                sig_ref[0] = jax.nn.sigmoid(acc).astype(sig_ref.dtype)

    return kernel


# ------------------------------ JAX wrapper ---------------------------------

@jax.jit
def base_net_forward(params, x_nchw):
    """BaseNet.forward: returns (net_output, before_sigmoid), both NCHW."""
    n, c0, h, w = x_nchw.shape
    kh, kw = params[0][0].shape[:2]
    num_layers = len(params)
    cf = params[-1][0].shape[-1]
    hw = h * w
    s_max = (kh - 1) * w + (kw - 1)
    l_final = hw - num_layers * s_max
    ho = h - num_layers * (kh - 1)
    wo = w - num_layers * (kw - 1)

    # NCHW -> (N, C, H*W): channels already on sublanes, flat spatial on lanes.
    # Pure reshape -- no transpose. Pad input channels to a sublane multiple so
    # every im2col stack is 8-row aligned (hidden widths are already multiples
    # of 8 in this ForwardLayers instantiation).
    cin_pad = -(-c0 // 8) * 8
    x_flat = jnp.pad(x_nchw.reshape(n, c0, hw),
                     ((0, 0), (0, cin_pad - c0), (0, 0)))

    # Per-layer im2col weights (Cout, kh*kw*Cin) and column biases (Cout, 1).
    flat_params = []
    in_specs = [pl.BlockSpec((1, cin_pad, hw), lambda i: (i, 0, 0))]
    for li, (wgt, b) in enumerate(params):
        _, _, cin, cout = wgt.shape
        if li == 0 and cin != cin_pad:
            wgt = jnp.pad(wgt, ((0, 0), (0, 0), (0, cin_pad - cin), (0, 0)))
            cin = cin_pad
        w_mat = wgt.reshape(kh * kw * cin, cout).T    # (Cout, kh*kw*Cin)
        b_col = b.reshape(cout, 1)
        flat_params += [w_mat, b_col]
        in_specs.append(pl.BlockSpec((cout, kh * kw * cin), lambda i: (0, 0)))
        in_specs.append(pl.BlockSpec((cout, 1), lambda i: (0, 0)))

    out_spec = pl.BlockSpec((1, cf, l_final), lambda i: (i, 0, 0))
    out_shape = (jax.ShapeDtypeStruct((n, cf, l_final), x_nchw.dtype),
                 jax.ShapeDtypeStruct((n, cf, l_final), x_nchw.dtype))

    sig_flat, pre_flat = pl.pallas_call(
        _make_fused_kernel(num_layers, kh, kw, w),
        out_shape=out_shape,
        grid=(n,),
        in_specs=in_specs,
        out_specs=(out_spec, out_spec),
        compiler_params=pltpu.CompilerParams(
            dimension_semantics=("parallel",)),
    )(x_flat, *flat_params)

    # Flat (stride-W) valid region -> NCHW crop: one tiny pad+reshape+slice.
    pad = ho * w - l_final

    def crop(y_flat):
        y = jnp.pad(y_flat, ((0, 0), (0, 0), (0, pad)))
        return y.reshape(n, cf, ho, w)[:, :, :, :wo]

    return crop(sig_flat), crop(pre_flat)


# --------------------------- params / reference -----------------------------

def init_forward_layers(key, in_channels, num_channels=8, num_layers=3,
                        kernel_size=3):
    """Deterministic synthetic parameters for the ForwardLayers stack."""
    params = []
    cin = in_channels
    for i in range(num_layers):
        cout = 1 if i == num_layers - 1 else num_channels
        key, kw_key, kb_key = jax.random.split(key, 3)
        fan_in = cin * kernel_size * kernel_size
        wgt = (jax.random.normal(kw_key, (kernel_size, kernel_size, cin, cout),
                                 jnp.float32) / jnp.sqrt(float(fan_in)))
        b = jax.random.normal(kb_key, (1, cout), jnp.float32) * 0.01
        params.append((wgt, b))
        cin = cout
    return params


def calculate_shape_decreases_3d_net(params, input_crop_size):
    """Analog of BaseNet.calculate_shape_decreases_3D_Net (structure-only)."""
    cropsize_x, cropsize_y, cropsize_z = input_crop_size
    shrink = sum(wgt.shape[0] - 1 for wgt, _ in params)
    return (shrink, shrink, cropsize_z - params[-1][0].shape[-1])


def _reference_forward(params, x_nchw):
    """Pure-JAX reference (lax conv) for the sanity check."""
    x = x_nchw
    n_layers = len(params)
    for i, (wgt, b) in enumerate(params):
        w_oihw = jnp.transpose(wgt, (3, 2, 0, 1))      # KHKWIO -> OIHW
        x = jax.lax.conv_general_dilated(
            x, w_oihw, window_strides=(1, 1), padding="VALID",
            dimension_numbers=("NCHW", "OIHW", "NCHW"))
        x = x + b[0][None, :, None, None]
        if i < n_layers - 1:
            x = jnp.maximum(x, 0.0)
    return jax.nn.sigmoid(x), x


if __name__ == "__main__":
    key = jax.random.PRNGKey(0)
    key, kx, kp = jax.random.split(key, 3)

    # Small NCHW input: batch=2, channels(z)=4, spatial 16x16.
    x = jax.random.normal(kx, (2, 4, 16, 16), jnp.float32)
    params = init_forward_layers(kp, in_channels=4, num_channels=8,
                                 num_layers=3, kernel_size=3)

    net_output, before_sigmoid = base_net_forward(params, x)
    jax.block_until_ready((net_output, before_sigmoid))

    ref_out, ref_pre = _reference_forward(params, x)
    assert net_output.shape == (2, 1, 10, 10), net_output.shape
    assert before_sigmoid.shape == (2, 1, 10, 10), before_sigmoid.shape
    assert jnp.allclose(net_output, ref_out, atol=1e-4, rtol=1e-4)
    assert jnp.allclose(before_sigmoid, ref_pre, atol=1e-4, rtol=1e-4)

    print("KERNEL_OK")
</pallas_src>

<mosaic_0001>
module attributes {stable_mosaic.version = 11 : i64} {
  func.func @kernel(%arg0: i32, %arg1: memref<1x8x256xf32, #tpu.memory_space<vmem>>, %arg2: memref<8x72xf32, #tpu.memory_space<vmem>>, %arg3: memref<8x1xf32, #tpu.memory_space<vmem>>, %arg4: memref<8x72xf32, #tpu.memory_space<vmem>>, %arg5: memref<8x1xf32, #tpu.memory_space<vmem>>, %arg6: memref<1x72xf32, #tpu.memory_space<vmem>>, %arg7: memref<1x1xf32, #tpu.memory_space<vmem>>, %arg8: memref<1x1x154xf32, #tpu.memory_space<vmem>>, %arg9: memref<1x1x154xf32, #tpu.memory_space<vmem>>) attributes {dimension_semantics = [#tpu.dimension_semantics<parallel>], iteration_bounds = array<i64: 2>, scalar_prefetch = 0 : i64, scratch_operands = 0 : i64, tpu.core_type = #tpu.core_type<tc>, window_params = [{transform_indices = @transform_0, window_bounds = array<i64: 1, 8, 256>}, {pipeline_mode = #tpu.pipeline_mode<synchronous>, transform_indices = @transform_1, window_bounds = array<i64: 8, 72>}, {pipeline_mode = #tpu.pipeline_mode<synchronous>, transform_indices = @transform_2, window_bounds = array<i64: 8, 1>}, {pipeline_mode = #tpu.pipeline_mode<synchronous>, transform_indices = @transform_3, window_bounds = array<i64: 8, 72>}, {pipeline_mode = #tpu.pipeline_mode<synchronous>, transform_indices = @transform_4, window_bounds = array<i64: 8, 1>}, {pipeline_mode = #tpu.pipeline_mode<synchronous>, transform_indices = @transform_5, window_bounds = array<i64: 1, 72>}, {pipeline_mode = #tpu.pipeline_mode<synchronous>, transform_indices = @transform_6, window_bounds = array<i64: 1, 1>}, {transform_indices = @transform_7, window_bounds = array<i64: 1, 1, 154>}, {transform_indices = @transform_8, window_bounds = array<i64: 1, 1, 154>}]} {
    %c0 = arith.constant 0 : index
    %c0_0 = arith.constant 0 : index
    %c0_1 = arith.constant 0 : index
    %0 = vector.load %arg1[%c0, %c0_0, %c0_1] : memref<1x8x256xf32, #tpu.memory_space<vmem>>, vector<1x8x256xf32>
    %1 = vector.shape_cast %0 : vector<1x8x256xf32> to vector<8x256xf32>
    %c0_2 = arith.constant 0 : index
    %c0_3 = arith.constant 0 : index
    %2 = vector.load %arg2[%c0_2, %c0_3] : memref<8x72xf32, #tpu.memory_space<vmem>>, vector<8x72xf32>
    %c0_4 = arith.constant 0 : index
    %c0_5 = arith.constant 0 : index
    %3 = vector.load %arg3[%c0_4, %c0_5] : memref<8x1xf32, #tpu.memory_space<vmem>>, vector<8x1xf32>
    %4 = vector.extract_strided_slice %1 {offsets = [0, 0], sizes = [8, 222], strides = [1, 1]} : vector<8x256xf32> to vector<8x222xf32>
    %5 = vector.extract_strided_slice %1 {offsets = [0, 1], sizes = [8, 222], strides = [1, 1]} : vector<8x256xf32> to vector<8x222xf32>
    %6 = vector.extract_strided_slice %1 {offsets = [0, 2], sizes = [8, 222], strides = [1, 1]} : vector<8x256xf32> to vector<8x222xf32>
    %7 = vector.extract_strided_slice %1 {offsets = [0, 16], sizes = [8, 222], strides = [1, 1]} : vector<8x256xf32> to vector<8x222xf32>
    %8 = vector.extract_strided_slice %1 {offsets = [0, 17], sizes = [8, 222], strides = [1, 1]} : vector<8x256xf32> to vector<8x222xf32>
    %9 = vector.extract_strided_slice %1 {offsets = [0, 18], sizes = [8, 222], strides = [1, 1]} : vector<8x256xf32> to vector<8x222xf32>
    %10 = vector.extract_strided_slice %1 {offsets = [0, 32], sizes = [8, 222], strides = [1, 1]} : vector<8x256xf32> to vector<8x222xf32>
    %11 = vector.extract_strided_slice %1 {offsets = [0, 33], sizes = [8, 222], strides = [1, 1]} : vector<8x256xf32> to vector<8x222xf32>
    %12 = vector.extract_strided_slice %1 {offsets = [0, 34], sizes = [8, 222], strides = [1, 1]} : vector<8x256xf32> to vector<8x222xf32>
    %13 = tpu.concatenate %4, %5, %6, %7, %8, %9, %10, %11, %12 in 0 : vector<8x222xf32>, vector<8x222xf32>, vector<8x222xf32>, vector<8x222xf32>, vector<8x222xf32>, vector<8x222xf32>, vector<8x222xf32>, vector<8x222xf32>, vector<8x222xf32> -> vector<72x222xf32>
    %cst = arith.constant dense<0.000000e+00> : vector<8x222xf32>
    %14 = tpu.matmul %2, %13, %cst {dimension_numbers = #tpu.dot_dimension_numbers<[1], [0], [0], [1], [0, 0, 1, 1], [], []>} : vector<8x72xf32>, vector<72x222xf32>, vector<8x222xf32> -> vector<8x222xf32>
    %15 = vector.broadcast %3 : vector<8x1xf32> to vector<8x222xf32>
    %16 = arith.addf %14, %15 : vector<8x222xf32>
    %cst_6 = arith.constant 0.000000e+00 : f32
    %17 = vector.broadcast %cst_6 : f32 to vector<8x222xf32>
    %18 = arith.maximumf %16, %17 : vector<8x222xf32>
    %c0_7 = arith.constant 0 : index
    %c0_8 = arith.constant 0 : index
    %19 = vector.load %arg4[%c0_7, %c0_8] : memref<8x72xf32, #tpu.memory_space<vmem>>, vector<8x72xf32>
    %c0_9 = arith.constant 0 : index
    %c0_10 = arith.constant 0 : index
    %20 = vector.load %arg5[%c0_9, %c0_10] : memref<8x1xf32, #tpu.memory_space<vmem>>, vector<8x1xf32>
    %21 = vector.extract_strided_slice %18 {offsets = [0, 0], sizes = [8, 188], strides = [1, 1]} : vector<8x222xf32> to vector<8x188xf32>
    %22 = vector.extract_strided_slice %18 {offsets = [0, 1], sizes = [8, 188], strides = [1, 1]} : vector<8x222xf32> to vector<8x188xf32>
    %23 = vector.extract_strided_slice %18 {offsets = [0, 2], sizes = [8, 188], strides = [1, 1]} : vector<8x222xf32> to vector<8x188xf32>
    %24 = vector.extract_strided_slice %18 {offsets = [0, 16], sizes = [8, 188], strides = [1, 1]} : vector<8x222xf32> to vector<8x188xf32>
    %25 = vector.extract_strided_slice %18 {offsets = [0, 17], sizes = [8, 188], strides = [1, 1]} : vector<8x222xf32> to vector<8x188xf32>
    %26 = vector.extract_strided_slice %18 {offsets = [0, 18], sizes = [8, 188], strides = [1, 1]} : vector<8x222xf32> to vector<8x188xf32>
    %27 = vector.extract_strided_slice %18 {offsets = [0, 32], sizes = [8, 188], strides = [1, 1]} : vector<8x222xf32> to vector<8x188xf32>
    %28 = vector.extract_strided_slice %18 {offsets = [0, 33], sizes = [8, 188], strides = [1, 1]} : vector<8x222xf32> to vector<8x188xf32>
    %29 = vector.extract_strided_slice %18 {offsets = [0, 34], sizes = [8, 188], strides = [1, 1]} : vector<8x222xf32> to vector<8x188xf32>
    %30 = tpu.concatenate %21, %22, %23, %24, %25, %26, %27, %28, %29 in 0 : vector<8x188xf32>, vector<8x188xf32>, vector<8x188xf32>, vector<8x188xf32>, vector<8x188xf32>, vector<8x188xf32>, vector<8x188xf32>, vector<8x188xf32>, vector<8x188xf32> -> vector<72x188xf32>
    %cst_11 = arith.constant dense<0.000000e+00> : vector<8x188xf32>
    %31 = tpu.matmul %19, %30, %cst_11 {dimension_numbers = #tpu.dot_dimension_numbers<[1], [0], [0], [1], [0, 0, 1, 1], [], []>} : vector<8x72xf32>, vector<72x188xf32>, vector<8x188xf32> -> vector<8x188xf32>
    %32 = vector.broadcast %20 : vector<8x1xf32> to vector<8x188xf32>
    %33 = arith.addf %31, %32 : vector<8x188xf32>
    %cst_12 = arith.constant 0.000000e+00 : f32
    %34 = vector.broadcast %cst_12 : f32 to vector<8x188xf32>
    %35 = arith.maximumf %33, %34 : vector<8x188xf32>
    %c0_13 = arith.constant 0 : index
    %c0_14 = arith.constant 0 : index
    %36 = vector.load %arg6[%c0_13, %c0_14] : memref<1x72xf32, #tpu.memory_space<vmem>>, vector<1x72xf32>
    %c0_15 = arith.constant 0 : index
    %c0_16 = arith.constant 0 : index
    %37 = vector.load %arg7[%c0_15, %c0_16] : memref<1x1xf32, #tpu.memory_space<vmem>>, vector<1x1xf32>
    %38 = vector.extract_strided_slice %35 {offsets = [0, 0], sizes = [8, 154], strides = [1, 1]} : vector<8x188xf32> to vector<8x154xf32>
    %39 = vector.extract_strided_slice %35 {offsets = [0, 1], sizes = [8, 154], strides = [1, 1]} : vector<8x188xf32> to vector<8x154xf32>
    %40 = vector.extract_strided_slice %35 {offsets = [0, 2], sizes = [8, 154], strides = [1, 1]} : vector<8x188xf32> to vector<8x154xf32>
    %41 = vector.extract_strided_slice %35 {offsets = [0, 16], sizes = [8, 154], strides = [1, 1]} : vector<8x188xf32> to vector<8x154xf32>
    %42 = vector.extract_strided_slice %35 {offsets = [0, 17], sizes = [8, 154], strides = [1, 1]} : vector<8x188xf32> to vector<8x154xf32>
    %43 = vector.extract_strided_slice %35 {offsets = [0, 18], sizes = [8, 154], strides = [1, 1]} : vector<8x188xf32> to vector<8x154xf32>
    %44 = vector.extract_strided_slice %35 {offsets = [0, 32], sizes = [8, 154], strides = [1, 1]} : vector<8x188xf32> to vector<8x154xf32>
    %45 = vector.extract_strided_slice %35 {offsets = [0, 33], sizes = [8, 154], strides = [1, 1]} : vector<8x188xf32> to vector<8x154xf32>
    %46 = vector.extract_strided_slice %35 {offsets = [0, 34], sizes = [8, 154], strides = [1, 1]} : vector<8x188xf32> to vector<8x154xf32>
    %47 = tpu.concatenate %38, %39, %40, %41, %42, %43, %44, %45, %46 in 0 : vector<8x154xf32>, vector<8x154xf32>, vector<8x154xf32>, vector<8x154xf32>, vector<8x154xf32>, vector<8x154xf32>, vector<8x154xf32>, vector<8x154xf32>, vector<8x154xf32> -> vector<72x154xf32>
    %cst_17 = arith.constant dense<0.000000e+00> : vector<1x154xf32>
    %48 = tpu.matmul %36, %47, %cst_17 {dimension_numbers = #tpu.dot_dimension_numbers<[1], [0], [0], [1], [0, 0, 1, 1], [], []>} : vector<1x72xf32>, vector<72x154xf32>, vector<1x154xf32> -> vector<1x154xf32>
    %49 = vector.broadcast %37 : vector<1x1xf32> to vector<1x154xf32>
    %50 = arith.addf %48, %49 : vector<1x154xf32>
    %c0_18 = arith.constant 0 : index
    %c0_19 = arith.constant 0 : index
    %c0_20 = arith.constant 0 : index
    %51 = vector.load %arg9[%c0_18, %c0_19, %c0_20] : memref<1x1x154xf32, #tpu.memory_space<vmem>>, vector<1x1x154xf32>
    %52 = vector.shape_cast %51 : vector<1x1x154xf32> to vector<1x154xf32>
    %53 = vector.shape_cast %50 : vector<1x154xf32> to vector<1x1x154xf32>
    tpu.vector_store %arg9[%c0_18, %c0_19, %c0_20], %53 {strides = array<i32>} : memref<1x1x154xf32, #tpu.memory_space<vmem>>, vector<1x1x154xf32>,
    %54 = arith.negf %50 : vector<1x154xf32>
    %55 = math.exp %54 : vector<1x154xf32>
    %cst_21 = arith.constant 1.000000e+00 : f32
    %56 = vector.broadcast %cst_21 : f32 to vector<1x154xf32>
    %57 = arith.addf %56, %55 : vector<1x154xf32>
    %58 = arith.divf %56, %57 : vector<1x154xf32>
    %c0_22 = arith.constant 0 : index
    %c0_23 = arith.constant 0 : index
    %c0_24 = arith.constant 0 : index
    %59 = vector.load %arg8[%c0_22, %c0_23, %c0_24] : memref<1x1x154xf32, #tpu.memory_space<vmem>>, vector<1x1x154xf32>
    %60 = vector.shape_cast %59 : vector<1x1x154xf32> to vector<1x154xf32>
    %61 = vector.shape_cast %58 : vector<1x154xf32> to vector<1x1x154xf32>
    tpu.vector_store %arg8[%c0_22, %c0_23, %c0_24], %61 {strides = array<i32>} : memref<1x1x154xf32, #tpu.memory_space<vmem>>, vector<1x1x154xf32>,
    return
  }
  func.func @transform_0(%arg0: i32) -> (i32, i32, i32) {
    %c0_i32 = arith.constant 0 : i32
    %c0_i32_0 = arith.constant 0 : i32
    %c0_i32_1 = arith.constant 0 : i32
    return %arg0, %c0_i32, %c0_i32_0 : i32, i32, i32
  }
  func.func @transform_1(%arg0: i32) -> (i32, i32) {
    %c0_i32 = arith.constant 0 : i32
    %c0_i32_0 = arith.constant 0 : i32
    %c0_i32_1 = arith.constant 0 : i32
    return %c0_i32, %c0_i32_0 : i32, i32
  }
  func.func @transform_2(%arg0: i32) -> (i32, i32) {
    %c0_i32 = arith.constant 0 : i32
    %c0_i32_0 = arith.constant 0 : i32
    %c0_i32_1 = arith.constant 0 : i32
    return %c0_i32, %c0_i32_0 : i32, i32
  }
  func.func @transform_3(%arg0: i32) -> (i32, i32) {
    %c0_i32 = arith.constant 0 : i32
    %c0_i32_0 = arith.constant 0 : i32
    %c0_i32_1 = arith.constant 0 : i32
    return %c0_i32, %c0_i32_0 : i32, i32
  }
  func.func @transform_4(%arg0: i32) -> (i32, i32) {
    %c0_i32 = arith.constant 0 : i32
    %c0_i32_0 = arith.constant 0 : i32
    %c0_i32_1 = arith.constant 0 : i32
    return %c0_i32, %c0_i32_0 : i32, i32
  }
  func.func @transform_5(%arg0: i32) -> (i32, i32) {
    %c0_i32 = arith.constant 0 : i32
    %c0_i32_0 = arith.constant 0 : i32
    %c0_i32_1 = arith.constant 0 : i32
    return %c0_i32, %c0_i32_0 : i32, i32
  }
  func.func @transform_6(%arg0: i32) -> (i32, i32) {
    %c0_i32 = arith.constant 0 : i32
    %c0_i32_0 = arith.constant 0 : i32
    %c0_i32_1 = arith.constant 0 : i32
    return %c0_i32, %c0_i32_0 : i32, i32
  }
  func.func @transform_7(%arg0: i32) -> (i32, i32, i32) {
    %c0_i32 = arith.constant 0 : i32
    %c0_i32_0 = arith.constant 0 : i32
    %c0_i32_1 = arith.constant 0 : i32
    return %arg0, %c0_i32, %c0_i32_0 : i32, i32, i32
  }
  func.func @transform_8(%arg0: i32) -> (i32, i32, i32) {
    %c0_i32 = arith.constant 0 : i32
    %c0_i32_0 = arith.constant 0 : i32
    %c0_i32_1 = arith.constant 0 : i32
    return %arg0, %c0_i32, %c0_i32_0 : i32, i32, i32
  }
}

</mosaic_0001>

<llo_original>
// kernel: base_net_forward.1
$region0: #{base_net_forward.1}
  #allocation0 [shape = 'u32[]', space=smem, size = 0x4, offset = 0x4, fixed_abs, tag = 'smem constant byte address 0x4 - core index']
  #allocation1 [shape = 'u32[144,128]{1,0:T(1,128)}', space=vmem, size = 0x12000, scoped, tag = 'internal scratch']
  #allocation2 [shape = 'f32[1,1]{1,0:T(1,128)S(1)}', space=vmem, size = 0x200, scoped, tag = 'scoped memory for base_net_forward.1']
  %s0 = inlined_call_operand.vmem [shape: f32[2,8,256], index: 0, kind: input, shape index: {}]
  %s1 = inlined_call_operand.vmem [shape: f32[8,72], index: 1, kind: input, shape index: {}]
  %s2 = inlined_call_operand.vmem [shape: f32[8,1], index: 2, kind: input, shape index: {}]
  %s3 = inlined_call_operand.vmem [shape: f32[8,72], index: 3, kind: input, shape index: {}]
  %s4 = inlined_call_operand.vmem [shape: f32[8,1], index: 4, kind: input, shape index: {}]
  %s5 = inlined_call_operand.vmem [shape: f32[1,72], index: 5, kind: input, shape index: {}]
  %s6 = inlined_call_operand.<no memory space> [shape: f32[1,1], index: 6, kind: input, shape index: {}]
  %s7 = inlined_call_operand.vmem [shape: f32[2,1,154], index: 7, kind: output, shape index: {0}]
  %s8 = inlined_call_operand.vmem [shape: f32[2,1,154], index: 8, kind: output, shape index: {1}]
  %9 = xla_tuple %s7, %s8
  %s10 = sld [smem:[#allocation0]]
  $region69: #{base_net_forward.1} parent=0
    _
  %s12 = ssub.s32 1, %s10
  %s13 = scalar_select 0, %s12, %s10
  %v14 = vstv %s6
  %15 = vst [vmem:[#allocation2] sm:$0x1] %v14
  loop: start=0, step=1, limit=4
  $region2: #{base_net_forward.1} parent=0 // loop_pre_header
    _
  $region3: #{base_net_forward.1} parent=0 // loop_header
    %s17 = sphi 0, %s21
    %p18 = scmp.ge.s32.totalorder %s17, 4
    %s27 = sphi 0, %s29
    %s30 = sphi 0, %s27
    %s31 = sphi 0, %s30
    %s47 = sphi 0, %s31
    %s51 = sphi 0, %s51
    %s53 = sphi 0, %s51
    %s54 = sphi 0, %s53
    %s68 = sphi 0, %s54
    %s72 = sphi 0, %s72
    %s74 = sphi 0, %s72
    %s75 = sphi 0, %s74
    %s89 = sphi 0, %s75
    %s93 = sphi 0, %s93
    %s95 = sphi 0, %s93
    %s96 = sphi 0, %s95
    %s110 = sphi 0, %s96
    %s114 = sphi 0, %s114
    %s116 = sphi 0, %s114
    %s117 = sphi 0, %s116
    %s131 = sphi 0, %s117
    %s135 = sphi 0, %s135
    %s137 = sphi 0, %s135
    %s138 = sphi 0, %s137
    %s152 = sphi 0, %s138
    %s156 = sphi 0, %s156
    %s158 = sphi 0, %s156
    %s159 = sphi 0, %s158
    %s173 = sphi 0, %s159
    %s179 = sphi 0, %s181
    %s182 = sphi 0, %s179
    %s183 = sphi 0, %s182
    %s199 = sphi 0, %s183
    %s205 = sphi 0, %s207
    %s208 = sphi 0, %s205
    %s209 = sphi 0, %s208
    %s225 = sphi 0, %s209
  $region4: #{base_net_forward.1} parent=0 // loop_header_branch
    %20 = sbr.rel (%p18) target = $region8
  $region5: #{base_net_forward.1} parent=0 // loop_body
    %s22 = ssub.s32 %s17, 1
    %s23 = ssub.s32 %s17, 2
    %s24 = sadd.s32 %s17, 1
    %s25 = ssub.s32 %s17, %s24
    %p26 = scmp.eq.s32.totalorder %s25, 0
    %s28 = sadd.s32 %s27, 1
    %s29 = scalar_select %p26, %s27, %s28
    %p32 = pneg %p26
    %p33 = scmp.eq.s32.totalorder %s17, 1
    %p34 = por %p32, %p33
    %p35 = scmp.ne.s32.totalorder %s27, %s30
    %p36 = scmp.eq.s32.totalorder %s17, 0
    %p37 = por %p35, %p36
    %p38 = scmp.ne.s32.totalorder %s27, %s30
    %p39 = scmp.eq.s32.totalorder %s22, 1
    %p40 = por %p38, %p39
    %p41 = scmp.ne.s32.totalorder %s30, %s31
    %p42 = scmp.eq.s32.totalorder %s22, 0
    %p43 = por %p41, %p42
    %p44 = scmp.ne.s32.totalorder %s30, %s31
    %p45 = scmp.eq.s32.totalorder %s23, 1
    %p46 = por %p44, %p45
    %p48 = scmp.ne.s32.totalorder %s31, %s47
    %p49 = scmp.eq.s32.totalorder %s23, 0
    %p50 = por %p48, %p49
    %s52 = sadd.s32 %s51, 1
    %p55 = scmp.eq.s32.totalorder %s17, 1
    %p56 = scmp.ne.s32.totalorder %s51, %s53
    %p57 = scmp.eq.s32.totalorder %s17, 0
    %p58 = por %p56, %p57
    %p59 = scmp.ne.s32.totalorder %s51, %s53
    %p60 = scmp.eq.s32.totalorder %s22, 1
    %p61 = por %p59, %p60
    %p62 = scmp.ne.s32.totalorder %s53, %s54
    %p63 = scmp.eq.s32.totalorder %s22, 0
    %p64 = por %p62, %p63
    %p65 = scmp.ne.s32.totalorder %s53, %s54
    %p66 = scmp.eq.s32.totalorder %s23, 1
    %p67 = por %p65, %p66
    %p69 = scmp.ne.s32.totalorder %s54, %s68
    %p70 = scmp.eq.s32.totalorder %s23, 0
    %p71 = por %p69, %p70
    %s73 = sadd.s32 %s72, 1
    %p76 = scmp.eq.s32.totalorder %s17, 1
    %p77 = scmp.ne.s32.totalorder %s72, %s74
    %p78 = scmp.eq.s32.totalorder %s17, 0
    %p79 = por %p77, %p78
    %p80 = scmp.ne.s32.totalorder %s72, %s74
    %p81 = scmp.eq.s32.totalorder %s22, 1
    %p82 = por %p80, %p81
    %p83 = scmp.ne.s32.totalorder %s74, %s75
    %p84 = scmp.eq.s32.totalorder %s22, 0
    %p85 = por %p83, %p84
    %p86 = scmp.ne.s32.totalorder %s74, %s75
    %p87 = scmp.eq.s32.totalorder %s23, 1
    %p88 = por %p86, %p87
    %p90 = scmp.ne.s32.totalorder %s75, %s89
    %p91 = scmp.eq.s32.totalorder %s23, 0
    %p92 = por %p90, %p91
    %s94 = sadd.s32 %s93, 1
    %p97 = scmp.eq.s32.totalorder %s17, 1
    %p98 = scmp.ne.s32.totalorder %s93, %s95
    %p99 = scmp.eq.s32.totalorder %s17, 0
    %p100 = por %p98, %p99
    %p101 = scmp.ne.s32.totalorder %s93, %s95
    %p102 = scmp.eq.s32.totalorder %s22, 1
    %p103 = por %p101, %p102
    %p104 = scmp.ne.s32.totalorder %s95, %s96
    %p105 = scmp.eq.s32.totalorder %s22, 0
    %p106 = por %p104, %p105
    %p107 = scmp.ne.s32.totalorder %s95, %s96
    %p108 = scmp.eq.s32.totalorder %s23, 1
    %p109 = por %p107, %p108
    %p111 = scmp.ne.s32.totalorder %s96, %s110
    %p112 = scmp.eq.s32.totalorder %s23, 0
    %p113 = por %p111, %p112
    %s115 = sadd.s32 %s114, 1
    %p118 = scmp.eq.s32.totalorder %s17, 1
    %p119 = scmp.ne.s32.totalorder %s114, %s116
    %p120 = scmp.eq.s32.totalorder %s17, 0
    %p121 = por %p119, %p120
    %p122 = scmp.ne.s32.totalorder %s114, %s116
    %p123 = scmp.eq.s32.totalorder %s22, 1
    %p124 = por %p122, %p123
    %p125 = scmp.ne.s32.totalorder %s116, %s117
    %p126 = scmp.eq.s32.totalorder %s22, 0
    %p127 = por %p125, %p126
    %p128 = scmp.ne.s32.totalorder %s116, %s117
    %p129 = scmp.eq.s32.totalorder %s23, 1
    %p130 = por %p128, %p129
    %p132 = scmp.ne.s32.totalorder %s117, %s131
    %p133 = scmp.eq.s32.totalorder %s23, 0
    %p134 = por %p132, %p133
    %s136 = sadd.s32 %s135, 1
    %p139 = scmp.eq.s32.totalorder %s17, 1
    %p140 = scmp.ne.s32.totalorder %s135, %s137
    %p141 = scmp.eq.s32.totalorder %s17, 0
    %p142 = por %p140, %p141
    %p143 = scmp.ne.s32.totalorder %s135, %s137
    %p144 = scmp.eq.s32.totalorder %s22, 1
    %p145 = por %p143, %p144
    %p146 = scmp.ne.s32.totalorder %s137, %s138
    %p147 = scmp.eq.s32.totalorder %s22, 0
    %p148 = por %p146, %p147
    %p149 = scmp.ne.s32.totalorder %s137, %s138
    %p150 = scmp.eq.s32.totalorder %s23, 1
    %p151 = por %p149, %p150
    %p153 = scmp.ne.s32.totalorder %s138, %s152
    %p154 = scmp.eq.s32.totalorder %s23, 0
    %p155 = por %p153, %p154
    %s157 = sadd.s32 %s156, 1
    %p160 = scmp.eq.s32.totalorder %s17, 1
    %p161 = scmp.ne.s32.totalorder %s156, %s158
    %p162 = scmp.eq.s32.totalorder %s17, 0
    %p163 = por %p161, %p162
    %p164 = scmp.ne.s32.totalorder %s156, %s158
    %p165 = scmp.eq.s32.totalorder %s22, 1
    %p166 = por %p164, %p165
    %p167 = scmp.ne.s32.totalorder %s158, %s159
    %p168 = scmp.eq.s32.totalorder %s22, 0
    %p169 = por %p167, %p168
    %p170 = scmp.ne.s32.totalorder %s158, %s159
    %p171 = scmp.eq.s32.totalorder %s23, 1
    %p172 = por %p170, %p171
    %p174 = scmp.ne.s32.totalorder %s159, %s173
    %p175 = scmp.eq.s32.totalorder %s23, 0
    %p176 = por %p174, %p175
    %s177 = ssub.s32 %s17, %s24
    %p178 = scmp.eq.s32.totalorder %s177, 0
    %s180 = sadd.s32 %s179, 1
    %s181 = scalar_select %p178, %s179, %s180
    %p184 = pneg %p178
    %p185 = scmp.eq.s32.totalorder %s17, 1
    %p186 = por %p184, %p185
    %p187 = scmp.ne.s32.totalorder %s179, %s182
    %p188 = scmp.eq.s32.totalorder %s17, 0
    %p189 = por %p187, %p188
    %p190 = scmp.ne.s32.totalorder %s179, %s182
    %p191 = scmp.eq.s32.totalorder %s22, 1
    %p192 = por %p190, %p191
    %p193 = scmp.ne.s32.totalorder %s182, %s183
    %p194 = scmp.eq.s32.totalorder %s22, 0
    %p195 = por %p193, %p194
    %p196 = scmp.ne.s32.totalorder %s182, %s183
    %p197 = scmp.eq.s32.totalorder %s23, 1
    %p198 = por %p196, %p197
    %p200 = scmp.ne.s32.totalorder %s183, %s199
    %p201 = scmp.eq.s32.totalorder %s23, 0
    %p202 = por %p200, %p201
    %s203 = ssub.s32 %s17, %s24
    %p204 = scmp.eq.s32.totalorder %s203, 0
    %s206 = sadd.s32 %s205, 1
    %s207 = scalar_select %p204, %s205, %s206
    %p210 = pneg %p204
    %p211 = scmp.eq.s32.totalorder %s17, 1
    %p212 = por %p210, %p211
    %p213 = scmp.ne.s32.totalorder %s205, %s208
    %p214 = scmp.eq.s32.totalorder %s17, 0
    %p215 = por %p213, %p214
    %p216 = scmp.ne.s32.totalorder %s205, %s208
    %p217 = scmp.eq.s32.totalorder %s22, 1
    %p218 = por %p216, %p217
    %p219 = scmp.ne.s32.totalorder %s208, %s209
    %p220 = scmp.eq.s32.totalorder %s22, 0
    %p221 = por %p219, %p220
    %p222 = scmp.ne.s32.totalorder %s208, %s209
    %p223 = scmp.eq.s32.totalorder %s23, 1
    %p224 = por %p222, %p223
    %p226 = scmp.ne.s32.totalorder %s209, %s225
    %p227 = scmp.eq.s32.totalorder %s23, 0
    %p228 = por %p226, %p227
    %p229 = scmp.le.s32.totalorder 1, %s17
    %p230 = scmp.lt.s32.totalorder %s17, 3
    %p231 = pnand %p229, %p230
    %p232 = pneg %p231
    // Predicated region
    $region9: #{base_net_forward.1} parent=5 // pred_check
      _
    $region10: #{base_net_forward.1} parent=5 // pred_check_branch
      %234 = sbr.rel (%p231) target = $region12
    $region11: #{base_net_forward.1} parent=5 // pred_region
      %s235 = ssub.s32 %s17, 1
      // Predicated region
      $region13: #{base_net_forward.1} parent=11 // pred_check
        %p236 = pneg %p64
      $region14: #{base_net_forward.1} parent=11 // pred_check_branch
        %238 = sbr.rel (%p236) target = $region16
      $region15: #{base_net_forward.1} parent=11 // pred_region
        _
      $region16: #{base_net_forward.1} parent=11 // pred_fallthru
        _
      // Predicated region
      $region17: #{base_net_forward.1} parent=11 // pred_check
        %p239 = pneg %p85
      $region18: #{base_net_forward.1} parent=11 // pred_check_branch
        %241 = sbr.rel (%p239) target = $region20
      $region19: #{base_net_forward.1} parent=11 // pred_region
        _
      $region20: #{base_net_forward.1} parent=11 // pred_fallthru
        _
      // Predicated region
      $region21: #{base_net_forward.1} parent=11 // pred_check
        %p242 = pneg %p106
      $region22: #{base_net_forward.1} parent=11 // pred_check_branch
        %244 = sbr.rel (%p242) target = $region24
      $region23: #{base_net_forward.1} parent=11 // pred_region
        _
      $region24: #{base_net_forward.1} parent=11 // pred_fallthru
        _
      // Predicated region
      $region25: #{base_net_forward.1} parent=11 // pred_check
        %p245 = pneg %p127
      $region26: #{base_net_forward.1} parent=11 // pred_check_branch
        %247 = sbr.rel (%p245) target = $region28
      $region27: #{base_net_forward.1} parent=11 // pred_region
        _
      $region28: #{base_net_forward.1} parent=11 // pred_fallthru
        _
      // Predicated region
      $region29: #{base_net_forward.1} parent=11 // pred_check
        %p248 = pneg %p148
      $region30: #{base_net_forward.1} parent=11 // pred_check_branch
        %250 = sbr.rel (%p248) target = $region32
      $region31: #{base_net_forward.1} parent=11 // pred_region
        _
      $region32: #{base_net_forward.1} parent=11 // pred_fallthru
        _
      // Predicated region
      $region33: #{base_net_forward.1} parent=11 // pred_check
        %p251 = pneg %p169
      $region34: #{base_net_forward.1} parent=11 // pred_check_branch
        %253 = sbr.rel (%p251) target = $region36
      $region35: #{base_net_forward.1} parent=11 // pred_region
        _
      $region36: #{base_net_forward.1} parent=11 // pred_fallthru
        _
    $region12: #{base_net_forward.1} parent=5 // pred_fallthru
      _
    %p254 = scmp.lt.s32.totalorder %s17, 2
    // Predicated region
    $region37: #{base_net_forward.1} parent=5 // pred_check
      %p255 = pneg %p254
    $region38: #{base_net_forward.1} parent=5 // pred_check_branch
      %257 = sbr.rel (%p255) target = $region40
    $region39: #{base_net_forward.1} parent=5 // pred_region
      // Predicated region
      $region41: #{base_net_forward.1} parent=39 // pred_check
        %p258 = pneg %p37
      $region42: #{base_net_forward.1} parent=39 // pred_check_branch
        %260 = sbr.rel (%p258) target = $region44
      $region43: #{base_net_forward.1} parent=39 // pred_region
        %p261 = scmp.lt.s32.totalorder %s17, 1
        %s262 = scalar_select %p261, %s17, 1
        %s263 = smul.addr %s262, 2
        %s264 = smul.addr %s263, 8
        %s265 = scalar_lea.vmem %s0, %s264
      $region44: #{base_net_forward.1} parent=39 // pred_fallthru
        _
    $region40: #{base_net_forward.1} parent=5 // pred_fallthru
      _
    %p266 = scmp.le.s32.totalorder 1, %s17
    %p267 = scmp.lt.s32.totalorder %s17, 3
    %p268 = pnand %p266, %p267
    %p269 = pneg %p268
    // Predicated region
    $region45: #{base_net_forward.1} parent=5 // pred_check
      _
    $region46: #{base_net_forward.1} parent=5 // pred_check_branch
      %271 = sbr.rel (%p268) target = $region48
    $region47: #{base_net_forward.1} parent=5 // pred_region
      %s272 = ssub.s32 %s17, 1
      %p273 = scmp.lt.s32.totalorder %s22, 1
      %s274 = scalar_select %p273, %s22, 1
      %s275 = smul.addr %s274, 2
      %s276 = smul.addr %s275, 8
      %s277 = scalar_lea.vmem %s0, %s276
      %p278 = pneg %p43
      %p279 = pneg %p40
      %p280 = pneg %p64
      %p281 = pneg %p61
      %p282 = pneg %p85
      %p283 = pneg %p82
      %p284 = pneg %p106
      %p285 = pneg %p103
      %p286 = pneg %p127
      %p287 = pneg %p124
      %p288 = pneg %p148
      %p289 = pneg %p145
      %p290 = pneg %p169
      %p291 = pneg %p166
      %p292 = pneg %p195
      %p293 = pneg %p192
      %p294 = scmp.lt.s32.totalorder %s22, 1
      %s295 = scalar_select %p294, %s22, 1
      %s296 = smul.addr %s295, 2
      %s297 = scalar_lea.vmem %s7, %s296
      %p298 = pneg %p221
      %p299 = pneg %p218
      %p300 = scmp.lt.s32.totalorder %s22, 1
      %s301 = scalar_select %p300, %s22, 1
      %s302 = smul.addr %s301, 2
      %s303 = scalar_lea.vmem %s8, %s302
      %p304 = scmp.lt.s32.totalorder %s22, 1
      %s305 = scalar_select %p304, %s22, 1
      %s306 = smul.addr %s305, 2
      %s307 = smul.addr %s306, 8
      %s308 = scalar_lea.vmem %s0, %s307
      %p309 = scmp.lt.s32.totalorder %s22, 1
      %s310 = scalar_select %p309, %s22, 1
      %s311 = smul.addr %s310, 2
      %s312 = scalar_lea.vmem %s7, %s311
      %p313 = scmp.lt.s32.totalorder %s22, 1
      %s314 = scalar_select %p313, %s22, 1
      %s315 = smul.addr %s314, 2
      %s316 = scalar_lea.vmem %s8, %s315
      %v317 = vld [vmem:[%s308] sm:$0xff]
      %v318 = vld [vmem:[%s308 + $0x8] sm:$0xff]
      %v319 = vld [vmem:[%s1] sm:$0xff]
      %v320 = vld [vmem:[%s2] sm:$0xff]
      %323 = vrot.lane.b32.xlu0 %v317, 127
      %v324 = vpop.permute.xlu0 %323
      %325 = vrot.lane.b32.xlu0 %v318, 127
      %v326 = vpop.permute.xlu0 %325
      %vm327 = vcmask 1039360
      %v328 = vsel %vm327, %v324, %v326
      %331 = vrot.lane.b32.xlu0 %v317, 126
      %v332 = vpop.permute.xlu0 %331
      %333 = vrot.lane.b32.xlu0 %v318, 126
      %v334 = vpop.permute.xlu0 %333
      %vm335 = vcmask 1031168
      %v336 = vsel %vm335, %v332, %v334
      %339 = vrot.lane.b32.xlu0 %v317, 112
      %v340 = vpop.permute.xlu0 %339
      %341 = vrot.lane.b32.xlu0 %v318, 112
      %v342 = vpop.permute.xlu0 %341
      %vm343 = vcmask 916480
      %v344 = vsel %vm343, %v340, %v342
      %347 = vrot.lane.b32.xlu0 %v317, 111
      %v348 = vpop.permute.xlu0 %347
      %349 = vrot.lane.b32.xlu0 %v318, 111
      %v350 = vpop.permute.xlu0 %349
      %vm351 = vcmask 908288
      %v352 = vsel %vm351, %v348, %v350
      %355 = vrot.lane.b32.xlu0 %v317, 110
      %v356 = vpop.permute.xlu0 %355
      %357 = vrot.lane.b32.xlu0 %v318, 110
      %v358 = vpop.permute.xlu0 %357
      %vm359 = vcmask 900096
      %v360 = vsel %vm359, %v356, %v358
      %363 = vrot.lane.b32.xlu0 %v317, 96
      %v364 = vpop.permute.xlu0 %363
      %365 = vrot.lane.b32.xlu0 %v318, 96
      %v366 = vpop.permute.xlu0 %365
      %vm367 = vcmask 785408
      %v368 = vsel %vm367, %v364, %v366
      %371 = vrot.lane.b32.xlu0 %v317, 95
      %v372 = vpop.permute.xlu0 %371
      %373 = vrot.lane.b32.xlu0 %v318, 95
      %v374 = vpop.permute.xlu0 %373
      %vm375 = vcmask 777216
      %v376 = vsel %vm375, %v372, %v374
      %379 = vrot.lane.b32.xlu0 %v317, 94
      %v380 = vpop.permute.xlu0 %379
      %381 = vrot.lane.b32.xlu0 %v318, 94
      %v382 = vpop.permute.xlu0 %381
      %vm383 = vcmask 769024
      %v384 = vsel %vm383, %v380, %v382
      %388 = vset.pattern.permute.xlu0 0
      %389 = vperm.xlu0 %388, %v320
      %v390 = vpop.permute.xlu0 %389
      %vm392 = vcmask 588800
      %v394 = vsel %vm392, %v319, 0
      %396 = vmatprep.subr.mxu0 %v318
      %397 = vmatpush1.msra.mxu0 %v317
      %398 = vmatprep.subr.mxu0 %v326
      %399 = vmatpush1.msra.mxu0 %v328
      %400 = vmatprep.subr.mxu0 %v334
      %401 = vmatpush1.msra.mxu0 %v336
      %402 = vmatprep.subr.mxu0 %v342
      %403 = vmatpush1.msra.mxu0 %v344
      %404 = vmatprep.subr.mxu0 %v350
      %405 = vmatpush1.msra.mxu0 %v352
      %406 = vmatprep.subr.mxu0 %v358
      %407 = vmatpush1.msra.mxu0 %v360
      %408 = vmatprep.subr.mxu0 %v366
      %409 = vmatpush1.msra.mxu0 %v368
      %410 = vmatprep.subr.mxu0 %v374
      %411 = vmatpush1.msra.mxu0 %v376
      %412 = vmatprep.subr.mxu0 %v382
      %413 = vmatpush1.msra.mxu0 %v384
      %414 = vmatprep.subr.mxu0 0.0
      %415 = vmatpush1.msra.mxu0 0.0
      %416 = vmatprep.subr.mxu0 0.0
      %417 = vmatpush1.msra.mxu0 0.0
      %418 = vmatprep.subr.mxu0 0.0
      %419 = vmatpush1.msra.mxu0 0.0
      %420 = vmatprep.subr.mxu0 0.0
      %421 = vmatpush1.msra.mxu0 0.0
      %422 = vmatprep.subr.mxu0 0.0
      %423 = vmatpush1.msra.mxu0 0.0
      %424 = vmatprep.subr.mxu0 0.0
      %425 = vmatpush1.msra.mxu0 0.0
      %426 = vmatprep.subr.mxu0 0.0
      %427 = vmatpush1.msra.mxu0 0.0
      %428 = vmatprep.subr.mxu0 0.0
      %429 = vmatpush1.msra.mxu0 0.0
      %430 = vmatprep.subr.mxu0 0.0
      %431 = vmatpush1.msra.mxu0 0.0
      %432 = vmatprep.subr.mxu0 0.0
      %433 = vmatpush1.msra.mxu0 0.0
      %434 = vmatprep.subr.mxu0 0.0
      %435 = vmatpush1.msra.mxu0 0.0
      %436 = vmatprep.subr.mxu0 0.0
      %437 = vmatpush1.msra.mxu0 0.0
      %438 = vmatprep.subr.mxu0 0.0
      %439 = vmatpush1.msra.mxu0 0.0
      %440 = vmatprep.subr.mxu0 0.0
      %441 = vmatpush1.msra.mxu0 0.0
      %442 = vmatprep.subr.mxu0 0.0
      %443 = vmatpush1.msra.mxu0 0.0
      %444 = vmatprep.subr.mxu0 0.0
      %445 = vmatpush1.msra.mxu0 0.0
      %446 = vmatprep.subr.mxu0 0.0
      %447 = vmatpush1.msra.mxu0 0.0
      %448 = vmatprep.subr.mxu0 0.0
      %449 = vmatpush1.msra.mxu0 0.0
      %450 = vmatprep.subr.mxu0 0.0
      %451 = vmatpush1.msra.mxu0 0.0
      %452 = vmatprep.subr.mxu0 0.0
      %453 = vmatpush1.msra.mxu0 0.0
      %454 = vmatprep.subr.mxu0 0.0
      %455 = vmatpush1.msra.mxu0 0.0
      %456 = vmatprep.subr.mxu0 0.0
      %457 = vmatpush1.msra.mxu0 0.0
      %458 = vmatprep.subr.mxu0 0.0
      %459 = vmatpush1.msra.mxu0 0.0
      %460 = vmatprep.mubr.f32.mxu0 0.0
      %461 = vmatmul.mubr.f32.gmra.mrb[0].mxu0 %v394
      %v462 = vpop.f32.mrb[0].mxu0
      %v463 = vadd.f32 %v390, %v462
      %v464 = vpop.f32.mrb[0].mxu0
      %v465 = vadd.f32 %v390, %v464
      %466 = vdwg.mxu0
      %v467 = vmax.f32 %v463, 0.0
      %v468 = vmax.f32 %v465, 0.0
      %v469 = vld [vmem:[%s3] sm:$0xff]
      %v470 = vld [vmem:[%s4] sm:$0xff]
      %473 = vrot.lane.b32.xlu0 %v467, 127
      %v474 = vpop.permute.xlu0 %473
      %475 = vrot.lane.b32.xlu0 %v468, 127
      %v476 = vpop.permute.xlu0 %475
      %v477 = vsel %vm327, %v474, %v476
      %480 = vrot.lane.b32.xlu0 %v467, 126
      %v481 = vpop.permute.xlu0 %480
      %482 = vrot.lane.b32.xlu0 %v468, 126
      %v483 = vpop.permute.xlu0 %482
      %v484 = vsel %vm335, %v481, %v483
      %487 = vrot.lane.b32.xlu0 %v467, 112
      %v488 = vpop.permute.xlu0 %487
      %489 = vrot.lane.b32.xlu0 %v468, 112
      %v490 = vpop.permute.xlu0 %489
      %v491 = vsel %vm343, %v488, %v490
      %494 = vrot.lane.b32.xlu0 %v467, 111
      %v495 = vpop.permute.xlu0 %494
      %496 = vrot.lane.b32.xlu0 %v468, 111
      %v497 = vpop.permute.xlu0 %496
      %v498 = vsel %vm351, %v495, %v497
      %501 = vrot.lane.b32.xlu0 %v467, 110
      %v502 = vpop.permute.xlu0 %501
      %503 = vrot.lane.b32.xlu0 %v468, 110
      %v504 = vpop.permute.xlu0 %503
      %v505 = vsel %vm359, %v502, %v504
      %508 = vrot.lane.b32.xlu0 %v467, 96
      %v509 = vpop.permute.xlu0 %508
      %510 = vrot.lane.b32.xlu0 %v468, 96
      %v511 = vpop.permute.xlu0 %510
      %v512 = vsel %vm367, %v509, %v511
      %515 = vrot.lane.b32.xlu0 %v467, 95
      %v516 = vpop.permute.xlu0 %515
      %517 = vrot.lane.b32.xlu0 %v468, 95
      %v518 = vpop.permute.xlu0 %517
      %v519 = vsel %vm375, %v516, %v518
      %522 = vrot.lane.b32.xlu0 %v467, 94
      %v523 = vpop.permute.xlu0 %522
      %524 = vrot.lane.b32.xlu0 %v468, 94
      %v525 = vpop.permute.xlu0 %524
      %v526 = vsel %vm383, %v523, %v525
      %530 = vset.pattern.permute.xlu0 0
      %531 = vperm.xlu0 %530, %v470
      %v532 = vpop.permute.xlu0 %531
      %v535 = vsel %vm392, %v469, 0
      %537 = vmatprep.subr.mxu0 %v468
      %538 = vmatpush1.msra.mxu0 %v467
      %539 = vmatprep.subr.mxu0 %v476
      %540 = vmatpush1.msra.mxu0 %v477
      %541 = vmatprep.subr.mxu0 %v483
      %542 = vmatpush1.msra.mxu0 %v484
      %543 = vmatprep.subr.mxu0 %v490
      %544 = vmatpush1.msra.mxu0 %v491
      %545 = vmatprep.subr.mxu0 %v497
      %546 = vmatpush1.msra.mxu0 %v498
      %547 = vmatprep.subr.mxu0 %v504
      %548 = vmatpush1.msra.mxu0 %v505
      %549 = vmatprep.subr.mxu0 %v511
      %550 = vmatpush1.msra.mxu0 %v512
      %551 = vmatprep.subr.mxu0 %v518
      %552 = vmatpush1.msra.mxu0 %v519
      %553 = vmatprep.subr.mxu0 %v525
      %554 = vmatpush1.msra.mxu0 %v526
      %555 = vmatprep.subr.mxu0 0.0
      %556 = vmatpush1.msra.mxu0 0.0
      %557 = vmatprep.subr.mxu0 0.0
      %558 = vmatpush1.msra.mxu0 0.0
      %559 = vmatprep.subr.mxu0 0.0
      %560 = vmatpush1.msra.mxu0 0.0
      %561 = vmatprep.subr.mxu0 0.0
      %562 = vmatpush1.msra.mxu0 0.0
      %563 = vmatprep.subr.mxu0 0.0
      %564 = vmatpush1.msra.mxu0 0.0
      %565 = vmatprep.subr.mxu0 0.0
      %566 = vmatpush1.msra.mxu0 0.0
      %567 = vmatprep.subr.mxu0 0.0
      %568 = vmatpush1.msra.mxu0 0.0
      %569 = vmatprep.subr.mxu0 0.0
      %570 = vmatpush1.msra.mxu0 0.0
      %571 = vmatprep.subr.mxu0 0.0
      %572 = vmatpush1.msra.mxu0 0.0
      %573 = vmatprep.subr.mxu0 0.0
      %574 = vmatpush1.msra.mxu0 0.0
      %575 = vmatprep.subr.mxu0 0.0
      %576 = vmatpush1.msra.mxu0 0.0
      %577 = vmatprep.subr.mxu0 0.0
      %578 = vmatpush1.msra.mxu0 0.0
      %579 = vmatprep.subr.mxu0 0.0
      %580 = vmatpush1.msra.mxu0 0.0
      %581 = vmatprep.subr.mxu0 0.0
      %582 = vmatpush1.msra.mxu0 0.0
      %583 = vmatprep.subr.mxu0 0.0
      %584 = vmatpush1.msra.mxu0 0.0
      %585 = vmatprep.subr.mxu0 0.0
      %586 = vmatpush1.msra.mxu0 0.0
      %587 = vmatprep.subr.mxu0 0.0
      %588 = vmatpush1.msra.mxu0 0.0
      %589 = vmatprep.subr.mxu0 0.0
      %590 = vmatpush1.msra.mxu0 0.0
      %591 = vmatprep.subr.mxu0 0.0
      %592 = vmatpush1.msra.mxu0 0.0
      %593 = vmatprep.subr.mxu0 0.0
      %594 = vmatpush1.msra.mxu0 0.0
      %595 = vmatprep.subr.mxu0 0.0
      %596 = vmatpush1.msra.mxu0 0.0
      %597 = vmatprep.subr.mxu0 0.0
      %598 = vmatpush1.msra.mxu0 0.0
      %599 = vmatprep.subr.mxu0 0.0
      %600 = vmatpush1.msra.mxu0 0.0
      %601 = vmatprep.mubr.f32.mxu0 0.0
      %602 = vmatmul.mubr.f32.gmra.mrb[0].mxu0 %v535
      %v603 = vpop.f32.mrb[0].mxu0
      %v604 = vadd.f32 %v532, %v603
      %v605 = vpop.f32.mrb[0].mxu0
      %v606 = vadd.f32 %v532, %v605
      %607 = vdwg.mxu0
      %v608 = vmax.f32 %v604, 0.0
      %v609 = vmax.f32 %v606, 0.0
      %v610 = vld [vmem:[%s5] sm:$0x1]
      %v611 = vld [vmem:[#allocation2] sm:$0x1]
      %614 = vrot.lane.b32.xlu0 %v608, 127
      %v615 = vpop.permute.xlu0 %614
      %616 = vrot.lane.b32.xlu0 %v609, 127
      %v617 = vpop.permute.xlu0 %616
      %v618 = vsel %vm327, %v615, %v617
      %621 = vrot.lane.b32.xlu0 %v608, 126
      %v622 = vpop.permute.xlu0 %621
      %623 = vrot.lane.b32.xlu0 %v609, 126
      %v624 = vpop.permute.xlu0 %623
      %v625 = vsel %vm335, %v622, %v624
      %628 = vrot.lane.b32.xlu0 %v608, 112
      %v629 = vpop.permute.xlu0 %628
      %630 = vrot.lane.b32.xlu0 %v609, 112
      %v631 = vpop.permute.xlu0 %630
      %v632 = vsel %vm343, %v629, %v631
      %635 = vrot.lane.b32.xlu0 %v608, 111
      %v636 = vpop.permute.xlu0 %635
      %637 = vrot.lane.b32.xlu0 %v609, 111
      %v638 = vpop.permute.xlu0 %637
      %v639 = vsel %vm351, %v636, %v638
      %642 = vrot.lane.b32.xlu0 %v608, 110
      %v643 = vpop.permute.xlu0 %642
      %644 = vrot.lane.b32.xlu0 %v609, 110
      %v645 = vpop.permute.xlu0 %644
      %v646 = vsel %vm359, %v643, %v645
      %649 = vrot.lane.b32.xlu0 %v608, 96
      %v650 = vpop.permute.xlu0 %649
      %651 = vrot.lane.b32.xlu0 %v609, 96
      %v652 = vpop.permute.xlu0 %651
      %v653 = vsel %vm367, %v650, %v652
      %656 = vrot.lane.b32.xlu0 %v608, 95
      %v657 = vpop.permute.xlu0 %656
      %658 = vrot.lane.b32.xlu0 %v609, 95
      %v659 = vpop.permute.xlu0 %658
      %v660 = vsel %vm375, %v657, %v659
      %663 = vrot.lane.b32.xlu0 %v608, 94
      %v664 = vpop.permute.xlu0 %663
      %665 = vrot.lane.b32.xlu0 %v609, 94
      %v666 = vpop.permute.xlu0 %665
      %v667 = vsel %vm383, %v664, %v666
      %671 = vset.pattern.permute.xlu0 0
      %672 = vperm.xlu0 %671, %v611
      %v673 = vpop.permute.xlu0 %672
      %v675 = vlaneseq
      %v676 = vshrl.u32 %v675, 7
      %v677 = vsub.s32 0, %v676
      %v678 = vrot.slane %v673, %v677
      %v680 = vsel %vm392, %v610, 0
      %682 = vmatprep.subr.mxu0 %v609
      %683 = vmatpush1.msra.mxu0 %v608
      %684 = vmatprep.subr.mxu0 %v617
      %685 = vmatpush1.msra.mxu0 %v618
      %686 = vmatprep.subr.mxu0 %v624
      %687 = vmatpush1.msra.mxu0 %v625
      %688 = vmatprep.subr.mxu0 %v631
      %689 = vmatpush1.msra.mxu0 %v632
      %690 = vmatprep.subr.mxu0 %v638
      %691 = vmatpush1.msra.mxu0 %v639
      %692 = vmatprep.subr.mxu0 %v645
      %693 = vmatpush1.msra.mxu0 %v646
      %694 = vmatprep.subr.mxu0 %v652
      %695 = vmatpush1.msra.mxu0 %v653
      %696 = vmatprep.subr.mxu0 %v659
      %697 = vmatpush1.msra.mxu0 %v660
      %698 = vmatprep.subr.mxu0 %v666
      %699 = vmatpush1.msra.mxu0 %v667
      %700 = vmatprep.subr.mxu0 0.0
      %701 = vmatpush1.msra.mxu0 0.0
      %702 = vmatprep.subr.mxu0 0.0
      %703 = vmatpush1.msra.mxu0 0.0
      %704 = vmatprep.subr.mxu0 0.0
      %705 = vmatpush1.msra.mxu0 0.0
      %706 = vmatprep.subr.mxu0 0.0
      %707 = vmatpush1.msra.mxu0 0.0
      %708 = vmatprep.subr.mxu0 0.0
      %709 = vmatpush1.msra.mxu0 0.0
      %710 = vmatprep.subr.mxu0 0.0
      %711 = vmatpush1.msra.mxu0 0.0
      %712 = vmatprep.subr.mxu0 0.0
      %713 = vmatpush1.msra.mxu0 0.0
      %714 = vmatprep.subr.mxu0 0.0
      %715 = vmatpush1.msra.mxu0 0.0
      %716 = vmatprep.subr.mxu0 0.0
      %717 = vmatpush1.msra.mxu0 0.0
      %718 = vmatprep.subr.mxu0 0.0
      %719 = vmatpush1.msra.mxu0 0.0
      %720 = vmatprep.subr.mxu0 0.0
      %721 = vmatpush1.msra.mxu0 0.0
      %722 = vmatprep.subr.mxu0 0.0
      %723 = vmatpush1.msra.mxu0 0.0
      %724 = vmatprep.subr.mxu0 0.0
      %725 = vmatpush1.msra.mxu0 0.0
      %726 = vmatprep.subr.mxu0 0.0
      %727 = vmatpush1.msra.mxu0 0.0
      %728 = vmatprep.subr.mxu0 0.0
      %729 = vmatpush1.msra.mxu0 0.0
      %730 = vmatprep.subr.mxu0 0.0
      %731 = vmatpush1.msra.mxu0 0.0
      %732 = vmatprep.subr.mxu0 0.0
      %733 = vmatpush1.msra.mxu0 0.0
      %734 = vmatprep.subr.mxu0 0.0
      %735 = vmatpush1.msra.mxu0 0.0
      %736 = vmatprep.subr.mxu0 0.0
      %737 = vmatpush1.msra.mxu0 0.0
      %738 = vmatprep.subr.mxu0 0.0
      %739 = vmatpush1.msra.mxu0 0.0
      %740 = vmatprep.subr.mxu0 0.0
      %741 = vmatpush1.msra.mxu0 0.0
      %742 = vmatprep.subr.mxu0 0.0
      %743 = vmatpush1.msra.mxu0 0.0
      %744 = vmatprep.subr.mxu0 0.0
      %745 = vmatpush1.msra.mxu0 0.0
      %746 = vmatprep.mubr.f32.mxu0 0.0
      %747 = vmatmul.mubr.f32.gmra.mrb[0].mxu0 %v680
      %v748 = vpop.f32.mrb[0].mxu0
      %v749 = vadd.f32 %v678, %v748
      %v750 = vpop.f32.mrb[0].mxu0
      %v751 = vadd.f32 %v678, %v750
      %752 = vdwg.mxu0
      %v755 = vcombine.low %v749, %v751
      %v757 = vunpack.c.l.s4 1966171168
      %v758 = vunpack.c.0.s8 %v757
      %v759 = vlaneseq
      %v760 = vshrl.u32 %v759, 7
      %v761 = vsub.s32 %v758, %v760
      %v762 = vrot.slane %v755, %v761
      %v764 = vunpack.c.l.s4 1966171168
      %v765 = vunpack.c.0.s8 %v764
      %v766 = vlaneseq
      %v767 = vshrl.u32 %v766, 7
      %v768 = vsub.s32 %v765, %v767
      %v769 = vrot.slane %v762, %v768
      %v771 = vlaneseq
      %vm772 = vcmp.ge.s32.totalorder %v771, 0
      %vm773 = vcmp.lt.s32.totalorder %v771, 154
      %vm774 = vmand %vm772, %vm773
      %775 = vst.msk [vmem:[%s316] sm:$0x3] %vm774, %v769
      %v776 = vxor.u32 %v749, 2147483648
      %v777 = vxor.u32 %v751, 2147483648
      %v778 = vmul.f32 %v776, 1.442695
      %v779 = vpow.pop %v778
      %v780 = vmul.f32 %v777, 1.442695
      %v781 = vpow.pop %v780
      %v782 = vadd.f32 %v779, 1.0
      %v783 = vadd.f32 %v781, 1.0
      %v784 = vrcp.pop %v782
      %v785 = vmul.f32 1.0, %v784
      %v786 = vrcp.pop %v783
      %v787 = vmul.f32 1.0, %v786
      %v790 = vcombine.low %v785, %v787
      %v792 = vunpack.c.l.s4 1966171168
      %v793 = vunpack.c.0.s8 %v792
      %v794 = vlaneseq
      %v795 = vshrl.u32 %v794, 7
      %v796 = vsub.s32 %v793, %v795
      %v797 = vrot.slane %v790, %v796
      %v799 = vunpack.c.l.s4 1966171168
      %v800 = vunpack.c.0.s8 %v799
      %v801 = vlaneseq
      %v802 = vshrl.u32 %v801, 7
      %v803 = vsub.s32 %v800, %v802
      %v804 = vrot.slane %v797, %v803
      %806 = vst.msk [vmem:[%s312] sm:$0x3] %vm774, %v804
      %p807 = scmp.lt.s32.totalorder %s22, 1
      %s808 = scalar_select %p807, %s22, 1
      %s809 = smul.addr %s808, 2
      %s810 = scalar_lea.vmem %s7, %s809
      %p811 = scmp.lt.s32.totalorder %s22, 1
      %s812 = scalar_select %p811, %s22, 1
      %s813 = smul.addr %s812, 2
      %s814 = scalar_lea.vmem %s8, %s813
      // Predicated region
      $region49: #{base_net_forward.1} parent=47 // pred_check
        %p815 = pneg %p192
      $region50: #{base_net_forward.1} parent=47 // pred_check_branch
        %817 = sbr.rel (%p815) target = $region52
      $region51: #{base_net_forward.1} parent=47 // pred_region
        _
      $region52: #{base_net_forward.1} parent=47 // pred_fallthru
        _
      // Predicated region
      $region53: #{base_net_forward.1} parent=47 // pred_check
        %p818 = pneg %p218
      $region54: #{base_net_forward.1} parent=47 // pred_check_branch
        %820 = sbr.rel (%p818) target = $region56
      $region55: #{base_net_forward.1} parent=47 // pred_region
        _
      $region56: #{base_net_forward.1} parent=47 // pred_fallthru
        _
    $region48: #{base_net_forward.1} parent=5 // pred_fallthru
      _
    %p821 = scmp.le.s32.totalorder 2, %s17
    // Predicated region
    $region57: #{base_net_forward.1} parent=5 // pred_check
      %p822 = pneg %p821
    $region58: #{base_net_forward.1} parent=5 // pred_check_branch
      %824 = sbr.rel (%p822) target = $region60
    $region59: #{base_net_forward.1} parent=5 // pred_region
      %s825 = ssub.s32 %s17, 2
      // Predicated region
      $region61: #{base_net_forward.1} parent=59 // pred_check
        %p826 = pneg %p198
      $region62: #{base_net_forward.1} parent=59 // pred_check_branch
        %828 = sbr.rel (%p826) target = $region64
      $region63: #{base_net_forward.1} parent=59 // pred_region
        %p829 = scmp.lt.s32.totalorder %s23, 1
        %s830 = scalar_select %p829, %s23, 1
        %s831 = smul.addr %s830, 2
        %s832 = scalar_lea.vmem %s7, %s831
      $region64: #{base_net_forward.1} parent=59 // pred_fallthru
        _
      // Predicated region
      $region65: #{base_net_forward.1} parent=59 // pred_check
        %p833 = pneg %p224
      $region66: #{base_net_forward.1} parent=59 // pred_check_branch
        %835 = sbr.rel (%p833) target = $region68
      $region67: #{base_net_forward.1} parent=59 // pred_region
        %p836 = scmp.lt.s32.totalorder %s23, 1
        %s837 = scalar_select %p836, %s23, 1
        %s838 = smul.addr %s837, 2
        %s839 = scalar_lea.vmem %s8, %s838
      $region68: #{base_net_forward.1} parent=59 // pred_fallthru
        _
    $region60: #{base_net_forward.1} parent=5 // pred_fallthru
      _
  $region6: #{base_net_forward.1} parent=0 // loop_footer
    %s21 = sadd.s32 1, %s17
  $region7: #{base_net_forward.1} parent=0 // loop_footer_branch
    %16 = sbr.rel target = $region3
  $region8: #{base_net_forward.1} parent=0 // loop_exit
    _

</llo_original>
